<compile_context>
chip_gen: v5e
topology: v5e:2x2
jax: 0.10.0
libtpu: 0.0.40
codegen_flags: <defaults>
</compile_context>

<pallas_src>
import jax
import jax.numpy as jnp
import numpy as np
from jax.experimental import pallas as pl
from jax.experimental.pallas import tpu as pltpu

# ---------------- problem sizes (small, consistent with the module) ----------
B = 2          # batch
S = 8          # sequence length
D = 32         # d_model
DFF = 128      # d_ff (4 * d_model, lane-dense hidden)


# ---------------- Pallas kernel: whole FFN, gridless, VMEM-resident ----------
def ffn_kernel(x_ref, w1_ref, b1_ref, w2_ref, b2_ref, o_ref):
    # x, w1, w2 arrive as bf16; biases as f32.
    x = x_ref[...]                                                     # bf16 [B*S, D]
    hid = jnp.dot(x, w1_ref[...], preferred_element_type=jnp.float32)  # f32  [B*S, DFF]
    hid = jnp.maximum(hid + b1_ref[...], 0.0)                          # bias + ReLU in f32
    hid_bf = hid.astype(jnp.bfloat16)                                  # bf16 LHS for 2nd MXU pass
    out = jnp.dot(hid_bf, w2_ref[...], preferred_element_type=jnp.float32)
    out = out + b2_ref[...]                                            # f32  [B*S, D]
    o_ref[...] = out.astype(o_ref.dtype)


def ffn_forward(x, w1, b1, w2, b2):
    b_, s_, d_ = x.shape
    rows = b_ * s_
    # Flatten batch+seq wrapper-side; cast MXU operands to bf16 (biases stay f32).
    x2d = x.reshape(rows, d_).astype(jnp.bfloat16)
    w1_bf = w1.astype(jnp.bfloat16)
    w2_bf = w2.astype(jnp.bfloat16)

    vmem = pl.BlockSpec(memory_space=pltpu.MemorySpace.VMEM)

    out2d = pl.pallas_call(
        ffn_kernel,
        out_shape=jax.ShapeDtypeStruct((rows, d_), jnp.float32),
        in_specs=[vmem, vmem, vmem, vmem, vmem],   # x, w1, b1, w2, b2: whole arrays in VMEM
        out_specs=vmem,
    )(x2d, w1_bf, b1, w2_bf, b2)

    return out2d.reshape(b_, s_, d_)


# ---------------- pure-JAX reference (same math, f32) -------------------------
def ref_ffn(x, w1, b1, w2, b2):
    hid = jnp.maximum(x @ w1 + b1, 0.0)
    return hid @ w2 + b2


# ---------------- deterministic parameter init --------------------------------
def make_params(key):
    k1, k2, k3, k4 = jax.random.split(key, 4)
    scale = 0.05
    w1 = scale * jax.random.normal(k1, (D, DFF), jnp.float32)
    w2 = scale * jax.random.normal(k2, (DFF, D), jnp.float32)
    b1 = 0.01 * jax.random.normal(k3, (1, DFF), jnp.float32)
    b2 = 0.01 * jax.random.normal(k4, (1, D), jnp.float32)
    return w1, b1, w2, b2


if __name__ == "__main__":
    key = jax.random.PRNGKey(0)
    kx, kp = jax.random.split(key, 2)

    x = jax.random.normal(kx, (B, S, D), jnp.float32)
    w1, b1, w2, b2 = make_params(kp)

    out = ffn_forward(x, w1, b1, w2, b2)
    out = jax.block_until_ready(out)

    ref = ref_ffn(x, w1, b1, w2, b2)
    # bf16 MXU operands vs f32 reference -> ~1e-2-level tolerance.
    np.testing.assert_allclose(np.asarray(out), np.asarray(ref), rtol=1e-2, atol=1e-2)

    print("KERNEL_OK")
</pallas_src>

<mosaic_0001>
module attributes {stable_mosaic.version = 11 : i64} {
  func.func @ffn_kernel(%arg0: memref<16x32xbf16, #tpu.memory_space<vmem>>, %arg1: memref<32x128xbf16, #tpu.memory_space<vmem>>, %arg2: memref<1x128xf32, #tpu.memory_space<vmem>>, %arg3: memref<128x32xbf16, #tpu.memory_space<vmem>>, %arg4: memref<1x32xf32, #tpu.memory_space<vmem>>, %arg5: memref<16x32xf32, #tpu.memory_space<vmem>>) attributes {dimension_semantics = [], scalar_prefetch = 0 : i64, scratch_operands = 0 : i64, tpu.core_type = #tpu.core_type<tc>} {
    %c0 = arith.constant 0 : index
    %c0_0 = arith.constant 0 : index
    %0 = vector.load %arg0[%c0, %c0_0] : memref<16x32xbf16, #tpu.memory_space<vmem>>, vector<16x32xbf16>
    %c0_1 = arith.constant 0 : index
    %c0_2 = arith.constant 0 : index
    %1 = vector.load %arg1[%c0_1, %c0_2] : memref<32x128xbf16, #tpu.memory_space<vmem>>, vector<32x128xbf16>
    %cst = arith.constant dense<0.000000e+00> : vector<16x128xf32>
    %2 = tpu.matmul %0, %1, %cst {dimension_numbers = #tpu.dot_dimension_numbers<[1], [0], [0], [1], [0, 0, 1, 1], [], []>} : vector<16x32xbf16>, vector<32x128xbf16>, vector<16x128xf32> -> vector<16x128xf32>
    %c0_3 = arith.constant 0 : index
    %c0_4 = arith.constant 0 : index
    %3 = vector.load %arg2[%c0_3, %c0_4] : memref<1x128xf32, #tpu.memory_space<vmem>>, vector<1x128xf32>
    %4 = vector.broadcast %3 : vector<1x128xf32> to vector<16x128xf32>
    %5 = arith.addf %2, %4 : vector<16x128xf32>
    %cst_5 = arith.constant 0.000000e+00 : f32
    %6 = vector.broadcast %cst_5 : f32 to vector<16x128xf32>
    %7 = arith.maximumf %5, %6 : vector<16x128xf32>
    %8 = arith.truncf %7 : vector<16x128xf32> to vector<16x128xbf16>
    %c0_6 = arith.constant 0 : index
    %c0_7 = arith.constant 0 : index
    %9 = vector.load %arg3[%c0_6, %c0_7] : memref<128x32xbf16, #tpu.memory_space<vmem>>, vector<128x32xbf16>
    %cst_8 = arith.constant dense<0.000000e+00> : vector<16x32xf32>
    %10 = tpu.matmul %8, %9, %cst_8 {dimension_numbers = #tpu.dot_dimension_numbers<[1], [0], [0], [1], [0, 0, 1, 1], [], []>} : vector<16x128xbf16>, vector<128x32xbf16>, vector<16x32xf32> -> vector<16x32xf32>
    %c0_9 = arith.constant 0 : index
    %c0_10 = arith.constant 0 : index
    %11 = vector.load %arg4[%c0_9, %c0_10] : memref<1x32xf32, #tpu.memory_space<vmem>>, vector<1x32xf32>
    %12 = vector.broadcast %11 : vector<1x32xf32> to vector<16x32xf32>
    %13 = arith.addf %10, %12 : vector<16x32xf32>
    %c0_11 = arith.constant 0 : index
    %c0_12 = arith.constant 0 : index
    %14 = vector.load %arg5[%c0_11, %c0_12] : memref<16x32xf32, #tpu.memory_space<vmem>>, vector<16x32xf32>
    tpu.vector_store %arg5[%c0_11, %c0_12], %13 {strides = array<i32>} : memref<16x32xf32, #tpu.memory_space<vmem>>, vector<16x32xf32>,
    return
  }
}

</mosaic_0001>

<llo_original>
// kernel: tpu_custom_call.1
$region0: #{tpu_custom_call.1}
  #allocation0 [shape = 'u32[]', space=smem, size = 0x4, offset = 0x4, fixed_abs, tag = 'smem constant byte address 0x4 - core index']
  #allocation1 [shape = 'u32[72,128]{1,0:T(1,128)}', space=vmem, size = 0x9000, scoped, tag = 'internal scratch']
  %s0 = inlined_call_operand.vmem [shape: bf16[16,32], index: 0, kind: input, shape index: {}]
  %s1 = inlined_call_operand.vmem [shape: bf16[32,128], index: 1, kind: input, shape index: {}]
  %s2 = inlined_call_operand.vmem [shape: f32[1,128], index: 2, kind: input, shape index: {}]
  %s3 = inlined_call_operand.vmem [shape: bf16[128,32], index: 3, kind: input, shape index: {}]
  %s4 = inlined_call_operand.vmem [shape: f32[1,32], index: 4, kind: input, shape index: {}]
  %s5 = inlined_call_operand.hbm [shape: f32[16,32], index: 5, kind: output, shape index: {}]
  %s6 = sld [smem:[#allocation0]]
  $region30: #{tpu_custom_call.1} parent=0
    _
  %s8 = ssub.s32 1, %s6
  %s9 = scalar_select 0, %s8, %s6
  $region1: #{tpu_custom_call.1} parent=0
    #allocation2 [shape = 'u8[8192]{0}', space=vmem, size = 0x2000, scoped, tag = 'output window, operand 0, single buffered']
    #allocation3 [shape = 's32[1]{0}', space=sflag, size = 0x4, scoped, tag = 'scoped memory for tpu_custom_call.1']
    %10 = vsyncpa [#allocation3], 0
    // Predicated region
    $region2: #{tpu_custom_call.1} parent=1 // pred_check
      _
    $region3: #{tpu_custom_call.1} parent=1 // pred_check_branch
      %12 = sbr.rel (0) target = $region5
    $region4: #{tpu_custom_call.1} parent=1 // pred_region
      _
    $region5: #{tpu_custom_call.1} parent=1 // pred_fallthru
      _
    // Predicated region
    $region6: #{tpu_custom_call.1} parent=1 // pred_check
      _
    $region7: #{tpu_custom_call.1} parent=1 // pred_check_branch
      %14 = sbr.rel (0) target = $region9
    $region8: #{tpu_custom_call.1} parent=1 // pred_region
      _
    $region9: #{tpu_custom_call.1} parent=1 // pred_fallthru
      _
    // Predicated region
    $region10: #{tpu_custom_call.1} parent=1 // pred_check
      _
    $region11: #{tpu_custom_call.1} parent=1 // pred_check_branch
      %16 = sbr.rel (0) target = $region13
    $region12: #{tpu_custom_call.1} parent=1 // pred_region
      _
    $region13: #{tpu_custom_call.1} parent=1 // pred_fallthru
      _
    // Predicated region
    $region14: #{tpu_custom_call.1} parent=1 // pred_check
      _
    $region15: #{tpu_custom_call.1} parent=1 // pred_check_branch
      %18 = sbr.rel (0) target = $region17
    $region16: #{tpu_custom_call.1} parent=1 // pred_region
      _
    $region17: #{tpu_custom_call.1} parent=1 // pred_fallthru
      _
    // Predicated region
    $region18: #{tpu_custom_call.1} parent=1 // pred_check
      _
    $region19: #{tpu_custom_call.1} parent=1 // pred_check_branch
      %20 = sbr.rel (0) target = $region21
    $region20: #{tpu_custom_call.1} parent=1 // pred_region
      _
    $region21: #{tpu_custom_call.1} parent=1 // pred_fallthru
      _
    %v22 = vld [vmem:[%s0] sm:$0xf]
    %v23 = vld [vmem:[%s0 + $0x4] sm:$0xf]
    %v24 = vld [vmem:[%s1] sm:$0xf]
    %v25 = vld [vmem:[%s1 + $0x4] sm:$0xf]
    %v26 = vld [vmem:[%s1 + $0x8] sm:$0xf]
    %v27 = vld [vmem:[%s1 + $0xc] sm:$0xf]
    %v28 = vld [vmem:[%s2] sm:$0x1]
    %v30 = vperm.slane %v28, 0
    %v34 = vunpack.c.l.b16 %v22
    %v35 = vunpack.c.l.b16 %v23
    %v36 = vpack.c.b16 %v35, %v34
    %v41 = vunpack.c.l.b16 %v24
    %v42 = vunpack.c.l.b16 %v25
    %v43 = vunpack.c.l.b16 %v26
    %v44 = vunpack.c.l.b16 %v27
    %v45 = vpack.c.b16 %v42, %v41
    %v46 = vpack.c.b16 %v44, %v43
    %vm49 = vcmask 261120
    %v51 = vsel %vm49, %v36, 0
    %53 = vmatpush.bf16.msra.mxu0 0
    %54 = vmatpush.bf16.msra.mxu0 0
    %55 = vmatpush.bf16.msra.mxu0 0
    %56 = vmatpush.bf16.msra.mxu0 0
    %57 = vmatpush.bf16.msra.mxu0 0
    %58 = vmatpush.bf16.msra.mxu0 0
    %59 = vmatpush.bf16.msra.mxu0 %v46
    %60 = vmatpush.bf16.msra.mxu0 %v45
    %61 = vmatmul.bf16.gmra.mxu0 %v51
    %v62 = vpop.f32.mrf.mxu0
    %v63 = vadd.f32 %v30, %v62
    %v64 = vpop.f32.mrf.mxu0
    %v65 = vadd.f32 %v30, %v64
    %66 = vdwg.mxu0
    %v67 = vmax.f32 %v63, 0.0
    %v68 = vmax.f32 %v65, 0.0
    %v69 = vpack.c.bf16 %v68, %v67
    %v70 = vld [vmem:[%s3] sm:$0xf]
    %v71 = vld [vmem:[%s3 + $0x4] sm:$0xf]
    %v72 = vld [vmem:[%s3 + $0x8] sm:$0xf]
    %v73 = vld [vmem:[%s3 + $0xc] sm:$0xf]
    %v74 = vld [vmem:[%s3 + $0x10] sm:$0xf]
    %v75 = vld [vmem:[%s3 + $0x14] sm:$0xf]
    %v76 = vld [vmem:[%s3 + $0x18] sm:$0xf]
    %v77 = vld [vmem:[%s3 + $0x1c] sm:$0xf]
    %v78 = vld [vmem:[%s3 + $0x20] sm:$0xf]
    %v79 = vld [vmem:[%s3 + $0x24] sm:$0xf]
    %v80 = vld [vmem:[%s3 + $0x28] sm:$0xf]
    %v81 = vld [vmem:[%s3 + $0x2c] sm:$0xf]
    %v82 = vld [vmem:[%s3 + $0x30] sm:$0xf]
    %v83 = vld [vmem:[%s3 + $0x34] sm:$0xf]
    %v84 = vld [vmem:[%s3 + $0x38] sm:$0xf]
    %v85 = vld [vmem:[%s3 + $0x3c] sm:$0xf]
    %v86 = vld [vmem:[%s4] sm:$0x1]
    %v88 = vperm.slane %v86, 0
    %v106 = vunpack.c.l.b16 %v70
    %v107 = vunpack.c.l.b16 %v71
    %v108 = vunpack.c.l.b16 %v72
    %v109 = vunpack.c.l.b16 %v73
    %v110 = vunpack.c.l.b16 %v74
    %v111 = vunpack.c.l.b16 %v75
    %v112 = vunpack.c.l.b16 %v76
    %v113 = vunpack.c.l.b16 %v77
    %v114 = vunpack.c.l.b16 %v78
    %v115 = vunpack.c.l.b16 %v79
    %v116 = vunpack.c.l.b16 %v80
    %v117 = vunpack.c.l.b16 %v81
    %v118 = vunpack.c.l.b16 %v82
    %v119 = vunpack.c.l.b16 %v83
    %v120 = vunpack.c.l.b16 %v84
    %v121 = vunpack.c.l.b16 %v85
    %v122 = vpack.c.b16 %v107, %v106
    %v123 = vpack.c.b16 %v109, %v108
    %v124 = vpack.c.b16 %v111, %v110
    %v125 = vpack.c.b16 %v113, %v112
    %v126 = vpack.c.b16 %v115, %v114
    %v127 = vpack.c.b16 %v117, %v116
    %v128 = vpack.c.b16 %v119, %v118
    %v129 = vpack.c.b16 %v121, %v120
    %138 = vmatpush.bf16.msra.mxu0 %v129
    %139 = vmatpush.bf16.msra.mxu0 %v128
    %140 = vmatpush.bf16.msra.mxu0 %v127
    %141 = vmatpush.bf16.msra.mxu0 %v126
    %142 = vmatpush.bf16.msra.mxu0 %v125
    %143 = vmatpush.bf16.msra.mxu0 %v124
    %144 = vmatpush.bf16.msra.mxu0 %v123
    %145 = vmatpush.bf16.msra.mxu0 %v122
    %146 = vmatmul.bf16.gmra.mxu0 %v69
    %v147 = vpop.f32.mrf.mxu0
    %v148 = vadd.f32 %v88, %v147
    %v149 = vpop.f32.mrf.mxu0
    %v150 = vadd.f32 %v88, %v149
    %151 = vdwg.mxu0
    %152 = vst.msk [vmem:[#allocation2] sm:$0xff] %vm49, %v148
    %153 = vst.msk [vmem:[#allocation2 + $0x8] sm:$0xff] %vm49, %v150
    // Predicated region
    $region22: #{tpu_custom_call.1} parent=1 // pred_check
      _
    $region23: #{tpu_custom_call.1} parent=1 // pred_check_branch
      %155 = sbr.rel (0) target = $region25
    $region24: #{tpu_custom_call.1} parent=1 // pred_region
      %157 = vsyncadd [#allocation3], 0
      %s158 = sshll.u32 [#allocation2], 4
      %s159 = int_to_ptr.vmem [resolvable:$true] %s158
      %s160 = sshll.u32 %s5, 4
      %s161 = int_to_ptr.hbm [resolvable:$true] %s160
      %166 = dma.vmem_to_hbm [thread:$0]  %s159, 256, %s161, [#allocation3], 128, 128, 8
    $region25: #{tpu_custom_call.1} parent=1 // pred_fallthru
      _
    // Predicated region
    $region26: #{tpu_custom_call.1} parent=1 // pred_check
      _
    $region27: #{tpu_custom_call.1} parent=1 // pred_check_branch
      %168 = sbr.rel (0) target = $region29
    $region28: #{tpu_custom_call.1} parent=1 // pred_region
      %170 = dma.done [#allocation3], 256
    $region29: #{tpu_custom_call.1} parent=1 // pred_fallthru
      _
    %171 = vsyncpa [#allocation3], 1

</llo_original>
